<compile_context>
chip_gen: v7x
topology: tpu7x:2x2x1
jax: 0.10.0
libtpu: 0.0.40
codegen_flags: <defaults>
</compile_context>

<pallas_src>
import numpy as np
import jax
import jax.numpy as jnp
from jax.experimental import pallas as pl
from jax.experimental.pallas import tpu as pltpu

# Logical (torch) dims and lane/MXU-padded dims.
IN_DIM, H1, H2, OUT_DIM = 26, 200, 400, 2
PAD_IN, PAD_H1, PAD_H2 = 32, 256, 512
N_FREQ = 6


def _round_up(n, m):
    return ((n + m - 1) // m) * m


def _diffusion_kernel(x_ref, sigma_ref, emb_ref,
                      w1_ref, b1_ref, w2_ref, b2_ref,
                      w3_ref, b3_ref, w4_ref, b4_ref,
                      out_ref):
    x = x_ref[...]                         # (TM, 2) f32
    tbl = emb_ref[...]                     # (4, PAD_IN) f32, passed as input
    coeff = tbl[0:1, :]                    # pi * 2**j (0 for raw / padded cols)
    use_cos = tbl[1:2, :] > 0.5
    use_y = tbl[2:3, :] > 0.5
    is_raw = tbl[3:4, :] > 0.5

    x0 = x[:, 0:1]
    y0 = x[:, 1:2]
    base = jnp.where(use_y, y0, x0)                      # (TM, PAD_IN)
    ang = base * coeff                                   # pi already folded in
    trig = jnp.where(use_cos, jnp.cos(ang), jnp.sin(ang))
    feat = jnp.where(is_raw, base, trig)                 # padded cols -> sin(0)=0

    h = jnp.dot(feat, w1_ref[...], preferred_element_type=jnp.float32) + b1_ref[...]
    h = jnp.maximum(h, 0.0)                              # (TM, PAD_H1)
    h = jnp.dot(h, w2_ref[...], preferred_element_type=jnp.float32) + b2_ref[...]
    h = jnp.maximum(h, 0.0)                              # (TM, PAD_H2)
    h = jnp.dot(h, w3_ref[...], preferred_element_type=jnp.float32) + b3_ref[...]
    h = jnp.maximum(h, 0.0)                              # (TM, PAD_H1)
    out = jnp.dot(h, w4_ref[...], preferred_element_type=jnp.float32) + b4_ref[...]

    out_ref[...] = out / sigma_ref[...]                  # (TM,1) broadcast -> (TM,2)


def make_embed_table():
    """Per-column embedding descriptor: [coeff, use_cos, use_y, is_raw], (4, PAD_IN).

    Column layout matches torch.hstack([cos_x, sin_x, cos_y, sin_y, x]) with
    6 zero columns of padding (matching zero-padded rows of w1).
    """
    freqs = np.exp2(np.arange(N_FREQ, dtype=np.float32))   # exp2(linspace(0,5,6))
    coeff = np.zeros(PAD_IN, np.float32)
    use_cos = np.zeros(PAD_IN, np.float32)
    use_y = np.zeros(PAD_IN, np.float32)
    is_raw = np.zeros(PAD_IN, np.float32)
    coeff[0:6] = np.pi * freqs;  use_cos[0:6] = 1.0                       # cos(pi f x)
    coeff[6:12] = np.pi * freqs                                           # sin(pi f x)
    coeff[12:18] = np.pi * freqs; use_cos[12:18] = 1.0; use_y[12:18] = 1.0  # cos(pi f y)
    coeff[18:24] = np.pi * freqs; use_y[18:24] = 1.0                      # sin(pi f y)
    is_raw[24] = 1.0                                                      # x
    is_raw[25] = 1.0; use_y[25] = 1.0                                     # y
    # cols 26..31: coeff=0, is_raw=0  ->  sin(0) = 0
    return jnp.asarray(np.stack([coeff, use_cos, use_y, is_raw]))         # (4, 32)


def _pad_to(a, shape):
    out = np.zeros(shape, np.float32)
    out[:a.shape[0], :a.shape[1]] = a
    return jnp.asarray(out)


def pack_params(params):
    """Torch-layout params (w: [out,in], b: [out]) -> padded kernel operands."""
    w1 = _pad_to(np.asarray(params["w1"]).T, (PAD_IN, PAD_H1))
    b1 = _pad_to(np.asarray(params["b1"])[None, :], (1, PAD_H1))
    w2 = _pad_to(np.asarray(params["w2"]).T, (PAD_H1, PAD_H2))
    b2 = _pad_to(np.asarray(params["b2"])[None, :], (1, PAD_H2))
    w3 = _pad_to(np.asarray(params["w3"]).T, (PAD_H2, PAD_H1))
    b3 = _pad_to(np.asarray(params["b3"])[None, :], (1, PAD_H1))
    w4 = _pad_to(np.asarray(params["w4"]).T, (PAD_H1, OUT_DIM))
    b4 = _pad_to(np.asarray(params["b4"])[None, :], (1, OUT_DIM))
    return (make_embed_table(), w1, b1, w2, b2, w3, b3, w4, b4)


def diffusion_forward(x, sigma, packed, *, tm=512):
    """x: (B, 2) f32, sigma: (B, 1) f32, packed: output of pack_params()."""
    assert tm % 8 == 0
    B = x.shape[0]
    tm_eff = min(tm, _round_up(B, 8))
    B_pad = _round_up(B, tm_eff)
    if B_pad != B:
        x = jnp.pad(x, ((0, B_pad - B), (0, 0)))
        sigma = jnp.pad(sigma, ((0, B_pad - B), (0, 0)), constant_values=1.0)

    grid = (pl.cdiv(B_pad, tm_eff),)

    def batch_map(i):
        return (i, 0)

    def const_map(i):
        return (0, 0)

    emb, w1, b1, w2, b2, w3, b3, w4, b4 = packed
    in_specs = [
        pl.BlockSpec((tm_eff, 2), batch_map),          # x        (tiled over batch)
        pl.BlockSpec((tm_eff, 1), batch_map),          # sigma    (tiled over batch)
        pl.BlockSpec(emb.shape, const_map),            # embedding table (resident)
        pl.BlockSpec(w1.shape, const_map), pl.BlockSpec(b1.shape, const_map),
        pl.BlockSpec(w2.shape, const_map), pl.BlockSpec(b2.shape, const_map),
        pl.BlockSpec(w3.shape, const_map), pl.BlockSpec(b3.shape, const_map),
        pl.BlockSpec(w4.shape, const_map), pl.BlockSpec(b4.shape, const_map),
    ]
    out_spec = pl.BlockSpec((tm_eff, OUT_DIM), batch_map)

    out = pl.pallas_call(
        _diffusion_kernel,
        out_shape=jax.ShapeDtypeStruct((B_pad, OUT_DIM), jnp.float32),
        grid=grid,
        in_specs=in_specs,
        out_specs=out_spec,
        compiler_params=pltpu.CompilerParams(
            dimension_semantics=("parallel",)),
    )(x, sigma, emb, w1, b1, w2, b2, w3, b3, w4, b4)
    return out[:B]


def init_params(key):
    """Deterministic synthetic params, torch nn.Linear layout (w: [out,in], b: [out])."""
    dims = [(H1, IN_DIM), (H2, H1), (H1, H2), (OUT_DIM, H1)]
    params = {}
    for i, ((fan_out, fan_in), k) in enumerate(zip(dims, jax.random.split(key, 4)), start=1):
        kw, kb = jax.random.split(k)
        bound = float(1.0 / np.sqrt(fan_in))
        params[f"w{i}"] = jax.random.uniform(kw, (fan_out, fan_in), jnp.float32, -bound, bound)
        params[f"b{i}"] = jax.random.uniform(kb, (fan_out,), jnp.float32, -bound, bound)
    return params


def reference_forward(x, sigma, params):
    """Pure-JAX reference mirroring the torch module exactly."""
    hi = jax.lax.Precision.HIGHEST
    freqs = jnp.exp2(jnp.linspace(0.0, 5.0, N_FREQ))
    ang_x = jnp.outer(x[:, 0], freqs) * jnp.pi
    ang_y = jnp.outer(x[:, 1], freqs) * jnp.pi
    feat = jnp.concatenate([jnp.cos(ang_x), jnp.sin(ang_x),
                            jnp.cos(ang_y), jnp.sin(ang_y), x], axis=1)
    h = jnp.maximum(jnp.dot(feat, params["w1"].T, precision=hi) + params["b1"], 0.0)
    h = jnp.maximum(jnp.dot(h, params["w2"].T, precision=hi) + params["b2"], 0.0)
    h = jnp.maximum(jnp.dot(h, params["w3"].T, precision=hi) + params["b3"], 0.0)
    out = jnp.dot(h, params["w4"].T, precision=hi) + params["b4"]
    return out / sigma


if __name__ == "__main__":
    key = jax.random.PRNGKey(0)
    k_params, k_data = jax.random.split(key)
    params = init_params(k_params)
    packed = pack_params(params)

    # Small single-tile case and a ragged multi-tile case (exercises the grid).
    for B, tm in ((8, 512), (300, 128)):
        kx, ks = jax.random.split(jax.random.fold_in(k_data, B))
        x = jax.random.normal(kx, (B, 2), jnp.float32)
        sigma = jax.random.uniform(ks, (B, 1), jnp.float32, minval=0.5, maxval=2.0)

        out = jax.block_until_ready(diffusion_forward(x, sigma, packed, tm=tm))
        ref = jax.block_until_ready(reference_forward(x, sigma, params))

        assert out.shape == (B, OUT_DIM) and out.dtype == jnp.float32
        np.testing.assert_allclose(np.asarray(out), np.asarray(ref),
                                   rtol=1e-4, atol=1e-4)
    print("KERNEL_OK")
</pallas_src>

<mosaic_0001>
module attributes {stable_mosaic.version = 11 : i64} {
  func.func @_diffusion_kernel(%arg0: i32, %arg1: memref<8x2xf32, #tpu.memory_space<vmem>>, %arg2: memref<8x1xf32, #tpu.memory_space<vmem>>, %arg3: memref<4x32xf32, #tpu.memory_space<vmem>>, %arg4: memref<32x256xf32, #tpu.memory_space<vmem>>, %arg5: memref<1x256xf32, #tpu.memory_space<vmem>>, %arg6: memref<256x512xf32, #tpu.memory_space<vmem>>, %arg7: memref<1x512xf32, #tpu.memory_space<vmem>>, %arg8: memref<512x256xf32, #tpu.memory_space<vmem>>, %arg9: memref<1x256xf32, #tpu.memory_space<vmem>>, %arg10: memref<256x2xf32, #tpu.memory_space<vmem>>, %arg11: memref<1x2xf32, #tpu.memory_space<vmem>>, %arg12: memref<8x2xf32, #tpu.memory_space<vmem>>) attributes {dimension_semantics = [#tpu.dimension_semantics<parallel>], iteration_bounds = array<i64: 1>, scalar_prefetch = 0 : i64, scratch_operands = 0 : i64, tpu.core_type = #tpu.core_type<tc>, window_params = [{transform_indices = @transform_0, window_bounds = array<i64: 8, 2>}, {transform_indices = @transform_1, window_bounds = array<i64: 8, 1>}, {pipeline_mode = #tpu.pipeline_mode<synchronous>, transform_indices = @transform_2, window_bounds = array<i64: 4, 32>}, {pipeline_mode = #tpu.pipeline_mode<synchronous>, transform_indices = @transform_3, window_bounds = array<i64: 32, 256>}, {pipeline_mode = #tpu.pipeline_mode<synchronous>, transform_indices = @transform_4, window_bounds = array<i64: 1, 256>}, {pipeline_mode = #tpu.pipeline_mode<synchronous>, transform_indices = @transform_5, window_bounds = array<i64: 256, 512>}, {pipeline_mode = #tpu.pipeline_mode<synchronous>, transform_indices = @transform_6, window_bounds = array<i64: 1, 512>}, {pipeline_mode = #tpu.pipeline_mode<synchronous>, transform_indices = @transform_7, window_bounds = array<i64: 512, 256>}, {pipeline_mode = #tpu.pipeline_mode<synchronous>, transform_indices = @transform_8, window_bounds = array<i64: 1, 256>}, {pipeline_mode = #tpu.pipeline_mode<synchronous>, transform_indices = @transform_9, window_bounds = array<i64: 256, 2>}, {pipeline_mode = #tpu.pipeline_mode<synchronous>, transform_indices = @transform_10, window_bounds = array<i64: 1, 2>}, {transform_indices = @transform_11, window_bounds = array<i64: 8, 2>}]} {
    %c0 = arith.constant 0 : index
    %c0_0 = arith.constant 0 : index
    %0 = vector.load %arg1[%c0, %c0_0] : memref<8x2xf32, #tpu.memory_space<vmem>>, vector<8x2xf32>
    %c0_1 = arith.constant 0 : index
    %c0_2 = arith.constant 0 : index
    %1 = vector.load %arg3[%c0_1, %c0_2] : memref<4x32xf32, #tpu.memory_space<vmem>>, vector<4x32xf32>
    %2 = vector.extract_strided_slice %1 {offsets = [0, 0], sizes = [1, 32], strides = [1, 1]} : vector<4x32xf32> to vector<1x32xf32>
    %3 = vector.extract_strided_slice %1 {offsets = [1, 0], sizes = [1, 32], strides = [1, 1]} : vector<4x32xf32> to vector<1x32xf32>
    %cst = arith.constant 5.000000e-01 : f32
    %4 = vector.broadcast %cst : f32 to vector<1x32xf32>
    %5 = arith.cmpf ogt, %3, %4 : vector<1x32xf32>
    %6 = vector.extract_strided_slice %1 {offsets = [2, 0], sizes = [1, 32], strides = [1, 1]} : vector<4x32xf32> to vector<1x32xf32>
    %cst_3 = arith.constant 5.000000e-01 : f32
    %7 = vector.broadcast %cst_3 : f32 to vector<1x32xf32>
    %8 = arith.cmpf ogt, %6, %7 : vector<1x32xf32>
    %9 = vector.extract_strided_slice %1 {offsets = [3, 0], sizes = [1, 32], strides = [1, 1]} : vector<4x32xf32> to vector<1x32xf32>
    %cst_4 = arith.constant 5.000000e-01 : f32
    %10 = vector.broadcast %cst_4 : f32 to vector<1x32xf32>
    %11 = arith.cmpf ogt, %9, %10 : vector<1x32xf32>
    %12 = vector.extract_strided_slice %0 {offsets = [0, 0], sizes = [8, 1], strides = [1, 1]} : vector<8x2xf32> to vector<8x1xf32>
    %13 = vector.extract_strided_slice %0 {offsets = [0, 1], sizes = [8, 1], strides = [1, 1]} : vector<8x2xf32> to vector<8x1xf32>
    %14 = vector.shape_cast %8 : vector<1x32xi1> to vector<1x32xi1>
    %15 = vector.broadcast %14 : vector<1x32xi1> to vector<8x32xi1>
    %16 = vector.shape_cast %13 : vector<8x1xf32> to vector<8x1xf32>
    %17 = vector.broadcast %16 : vector<8x1xf32> to vector<8x32xf32>
    %18 = vector.shape_cast %12 : vector<8x1xf32> to vector<8x1xf32>
    %19 = vector.broadcast %18 : vector<8x1xf32> to vector<8x32xf32>
    %20 = arith.select %15, %17, %19 : vector<8x32xi1>, vector<8x32xf32>
    %21 = vector.broadcast %2 : vector<1x32xf32> to vector<8x32xf32>
    %22 = arith.mulf %20, %21 : vector<8x32xf32>
    %23 = math.cos %22 : vector<8x32xf32>
    %24 = math.sin %22 : vector<8x32xf32>
    %25 = vector.shape_cast %5 : vector<1x32xi1> to vector<1x32xi1>
    %26 = vector.broadcast %25 : vector<1x32xi1> to vector<8x32xi1>
    %27 = arith.select %26, %23, %24 : vector<8x32xi1>, vector<8x32xf32>
    %28 = vector.shape_cast %11 : vector<1x32xi1> to vector<1x32xi1>
    %29 = vector.broadcast %28 : vector<1x32xi1> to vector<8x32xi1>
    %30 = arith.select %29, %20, %27 : vector<8x32xi1>, vector<8x32xf32>
    %c0_5 = arith.constant 0 : index
    %c0_6 = arith.constant 0 : index
    %31 = vector.load %arg4[%c0_5, %c0_6] : memref<32x256xf32, #tpu.memory_space<vmem>>, vector<32x256xf32>
    %cst_7 = arith.constant dense<0.000000e+00> : vector<8x256xf32>
    %32 = tpu.matmul %30, %31, %cst_7 {dimension_numbers = #tpu.dot_dimension_numbers<[1], [0], [0], [1], [0, 0, 1, 1], [], []>} : vector<8x32xf32>, vector<32x256xf32>, vector<8x256xf32> -> vector<8x256xf32>
    %c0_8 = arith.constant 0 : index
    %c0_9 = arith.constant 0 : index
    %33 = vector.load %arg5[%c0_8, %c0_9] : memref<1x256xf32, #tpu.memory_space<vmem>>, vector<1x256xf32>
    %34 = vector.broadcast %33 : vector<1x256xf32> to vector<8x256xf32>
    %35 = arith.addf %32, %34 : vector<8x256xf32>
    %cst_10 = arith.constant 0.000000e+00 : f32
    %36 = vector.broadcast %cst_10 : f32 to vector<8x256xf32>
    %37 = arith.maximumf %35, %36 : vector<8x256xf32>
    %c0_11 = arith.constant 0 : index
    %c0_12 = arith.constant 0 : index
    %38 = vector.load %arg6[%c0_11, %c0_12] : memref<256x512xf32, #tpu.memory_space<vmem>>, vector<256x512xf32>
    %cst_13 = arith.constant dense<0.000000e+00> : vector<8x512xf32>
    %39 = tpu.matmul %37, %38, %cst_13 {dimension_numbers = #tpu.dot_dimension_numbers<[1], [0], [0], [1], [0, 0, 1, 1], [], []>} : vector<8x256xf32>, vector<256x512xf32>, vector<8x512xf32> -> vector<8x512xf32>
    %c0_14 = arith.constant 0 : index
    %c0_15 = arith.constant 0 : index
    %40 = vector.load %arg7[%c0_14, %c0_15] : memref<1x512xf32, #tpu.memory_space<vmem>>, vector<1x512xf32>
    %41 = vector.broadcast %40 : vector<1x512xf32> to vector<8x512xf32>
    %42 = arith.addf %39, %41 : vector<8x512xf32>
    %cst_16 = arith.constant 0.000000e+00 : f32
    %43 = vector.broadcast %cst_16 : f32 to vector<8x512xf32>
    %44 = arith.maximumf %42, %43 : vector<8x512xf32>
    %c0_17 = arith.constant 0 : index
    %c0_18 = arith.constant 0 : index
    %45 = vector.load %arg8[%c0_17, %c0_18] : memref<512x256xf32, #tpu.memory_space<vmem>>, vector<512x256xf32>
    %cst_19 = arith.constant dense<0.000000e+00> : vector<8x256xf32>
    %46 = tpu.matmul %44, %45, %cst_19 {dimension_numbers = #tpu.dot_dimension_numbers<[1], [0], [0], [1], [0, 0, 1, 1], [], []>} : vector<8x512xf32>, vector<512x256xf32>, vector<8x256xf32> -> vector<8x256xf32>
    %c0_20 = arith.constant 0 : index
    %c0_21 = arith.constant 0 : index
    %47 = vector.load %arg9[%c0_20, %c0_21] : memref<1x256xf32, #tpu.memory_space<vmem>>, vector<1x256xf32>
    %48 = vector.broadcast %47 : vector<1x256xf32> to vector<8x256xf32>
    %49 = arith.addf %46, %48 : vector<8x256xf32>
    %cst_22 = arith.constant 0.000000e+00 : f32
    %50 = vector.broadcast %cst_22 : f32 to vector<8x256xf32>
    %51 = arith.maximumf %49, %50 : vector<8x256xf32>
    %c0_23 = arith.constant 0 : index
    %c0_24 = arith.constant 0 : index
    %52 = vector.load %arg10[%c0_23, %c0_24] : memref<256x2xf32, #tpu.memory_space<vmem>>, vector<256x2xf32>
    %cst_25 = arith.constant dense<0.000000e+00> : vector<8x2xf32>
    %53 = tpu.matmul %51, %52, %cst_25 {dimension_numbers = #tpu.dot_dimension_numbers<[1], [0], [0], [1], [0, 0, 1, 1], [], []>} : vector<8x256xf32>, vector<256x2xf32>, vector<8x2xf32> -> vector<8x2xf32>
    %c0_26 = arith.constant 0 : index
    %c0_27 = arith.constant 0 : index
    %54 = vector.load %arg11[%c0_26, %c0_27] : memref<1x2xf32, #tpu.memory_space<vmem>>, vector<1x2xf32>
    %55 = vector.broadcast %54 : vector<1x2xf32> to vector<8x2xf32>
    %56 = arith.addf %53, %55 : vector<8x2xf32>
    %c0_28 = arith.constant 0 : index
    %c0_29 = arith.constant 0 : index
    %57 = vector.load %arg2[%c0_28, %c0_29] : memref<8x1xf32, #tpu.memory_space<vmem>>, vector<8x1xf32>
    %58 = vector.broadcast %57 : vector<8x1xf32> to vector<8x2xf32>
    %59 = arith.divf %56, %58 : vector<8x2xf32>
    %c0_30 = arith.constant 0 : index
    %c0_31 = arith.constant 0 : index
    %60 = vector.load %arg12[%c0_30, %c0_31] : memref<8x2xf32, #tpu.memory_space<vmem>>, vector<8x2xf32>
    tpu.vector_store %arg12[%c0_30, %c0_31], %59 {strides = array<i32>} : memref<8x2xf32, #tpu.memory_space<vmem>>, vector<8x2xf32>,
    return
  }
  func.func @transform_0(%arg0: i32) -> (i32, i32) {
    %c0_i32 = arith.constant 0 : i32
    %c0_i32_0 = arith.constant 0 : i32
    return %arg0, %c0_i32 : i32, i32
  }
  func.func @transform_1(%arg0: i32) -> (i32, i32) {
    %c0_i32 = arith.constant 0 : i32
    %c0_i32_0 = arith.constant 0 : i32
    return %arg0, %c0_i32 : i32, i32
  }
  func.func @transform_2(%arg0: i32) -> (i32, i32) {
    %c0_i32 = arith.constant 0 : i32
    %c0_i32_0 = arith.constant 0 : i32
    %c0_i32_1 = arith.constant 0 : i32
    return %c0_i32, %c0_i32_0 : i32, i32
  }
  func.func @transform_3(%arg0: i32) -> (i32, i32) {
    %c0_i32 = arith.constant 0 : i32
    %c0_i32_0 = arith.constant 0 : i32
    %c0_i32_1 = arith.constant 0 : i32
    return %c0_i32, %c0_i32_0 : i32, i32
  }
  func.func @transform_4(%arg0: i32) -> (i32, i32) {
    %c0_i32 = arith.constant 0 : i32
    %c0_i32_0 = arith.constant 0 : i32
    %c0_i32_1 = arith.constant 0 : i32
    return %c0_i32, %c0_i32_0 : i32, i32
  }
  func.func @transform_5(%arg0: i32) -> (i32, i32) {
    %c0_i32 = arith.constant 0 : i32
    %c0_i32_0 = arith.constant 0 : i32
    %c0_i32_1 = arith.constant 0 : i32
    return %c0_i32, %c0_i32_0 : i32, i32
  }
  func.func @transform_6(%arg0: i32) -> (i32, i32) {
    %c0_i32 = arith.constant 0 : i32
    %c0_i32_0 = arith.constant 0 : i32
    %c0_i32_1 = arith.constant 0 : i32
    return %c0_i32, %c0_i32_0 : i32, i32
  }
  func.func @transform_7(%arg0: i32) -> (i32, i32) {
    %c0_i32 = arith.constant 0 : i32
    %c0_i32_0 = arith.constant 0 : i32
    %c0_i32_1 = arith.constant 0 : i32
    return %c0_i32, %c0_i32_0 : i32, i32
  }
  func.func @transform_8(%arg0: i32) -> (i32, i32) {
    %c0_i32 = arith.constant 0 : i32
    %c0_i32_0 = arith.constant 0 : i32
    %c0_i32_1 = arith.constant 0 : i32
    return %c0_i32, %c0_i32_0 : i32, i32
  }
  func.func @transform_9(%arg0: i32) -> (i32, i32) {
    %c0_i32 = arith.constant 0 : i32
    %c0_i32_0 = arith.constant 0 : i32
    %c0_i32_1 = arith.constant 0 : i32
    return %c0_i32, %c0_i32_0 : i32, i32
  }
  func.func @transform_10(%arg0: i32) -> (i32, i32) {
    %c0_i32 = arith.constant 0 : i32
    %c0_i32_0 = arith.constant 0 : i32
    %c0_i32_1 = arith.constant 0 : i32
    return %c0_i32, %c0_i32_0 : i32, i32
  }
  func.func @transform_11(%arg0: i32) -> (i32, i32) {
    %c0_i32 = arith.constant 0 : i32
    %c0_i32_0 = arith.constant 0 : i32
    return %arg0, %c0_i32 : i32, i32
  }
}

</mosaic_0001>

<llo_original>
// kernel: tpu_custom_call.1
$region0: #{tpu_custom_call.1}
  #allocation0 [shape = 'u32[]', space=smem, size = 0x4, offset = 0x4, fixed_abs, tag = 'smem constant byte address 0x4 - core index']
  #allocation1 [shape = 'u32[144,128]{1,0:T(1,128)}', space=vmem, size = 0x12000, scoped, tag = 'internal scratch']
  %s0 = inlined_call_operand.vmem [shape: f32[8,2], index: 0, kind: input, shape index: {}]
  %s1 = inlined_call_operand.vmem [shape: f32[8,1], index: 1, kind: input, shape index: {}]
  %s2 = inlined_call_operand.vmem [shape: f32[4,32], index: 2, kind: input, shape index: {}]
  %s3 = inlined_call_operand.vmem [shape: f32[32,256], index: 3, kind: input, shape index: {}]
  %s4 = inlined_call_operand.vmem [shape: f32[1,256], index: 4, kind: input, shape index: {}]
  %s5 = inlined_call_operand.hbm [shape: f32[256,512], index: 5, kind: input, shape index: {}]
  %s6 = inlined_call_operand.vmem [shape: f32[1,512], index: 6, kind: input, shape index: {}]
  %s7 = inlined_call_operand.hbm [shape: f32[512,256], index: 7, kind: input, shape index: {}]
  %s8 = inlined_call_operand.vmem [shape: f32[1,256], index: 8, kind: input, shape index: {}]
  %s9 = inlined_call_operand.vmem [shape: f32[256,2], index: 9, kind: input, shape index: {}]
  %s10 = inlined_call_operand.vmem [shape: f32[1,2], index: 10, kind: input, shape index: {}]
  %s11 = inlined_call_operand.vmem [shape: f32[8,2], index: 11, kind: output, shape index: {}]
  %s12 = sld [smem:[#allocation0]]
  $region62: #{tpu_custom_call.1} parent=0
    _
  %s14 = ssub.s32 1, %s12
  %s15 = scalar_select 0, %s14, %s12
  $region1: #{tpu_custom_call.1} parent=0
    #allocation2 [shape = 'u8[524288]{0}', space=vmem, size = 0x80000, scoped, tag = 'input window, operand 5, single buffered']
    #allocation3 [shape = 's32[1]{0}', space=sflag, size = 0x4, scoped, tag = 'scoped memory for tpu_custom_call.1']
    #allocation4 [shape = 'u8[524288]{0}', space=vmem, size = 0x80000, scoped, tag = 'input window, operand 7, single buffered']
    #allocation5 [shape = 's32[1]{0}', space=sflag, size = 0x4, scoped, tag = 'scoped memory for tpu_custom_call.1']
    %16 = vsyncpa [#allocation3], 0
    %17 = vsyncpa [#allocation5], 0
    // Predicated region
    $region2: #{tpu_custom_call.1} parent=1 // pred_check
      _
    $region3: #{tpu_custom_call.1} parent=1 // pred_check_branch
      %19 = sbr.rel (0) target = $region5
    $region4: #{tpu_custom_call.1} parent=1 // pred_region
      _
    $region5: #{tpu_custom_call.1} parent=1 // pred_fallthru
      _
    // Predicated region
    $region6: #{tpu_custom_call.1} parent=1 // pred_check
      _
    $region7: #{tpu_custom_call.1} parent=1 // pred_check_branch
      %21 = sbr.rel (0) target = $region9
    $region8: #{tpu_custom_call.1} parent=1 // pred_region
      _
    $region9: #{tpu_custom_call.1} parent=1 // pred_fallthru
      _
    // Predicated region
    $region10: #{tpu_custom_call.1} parent=1 // pred_check
      _
    $region11: #{tpu_custom_call.1} parent=1 // pred_check_branch
      %23 = sbr.rel (0) target = $region13
    $region12: #{tpu_custom_call.1} parent=1 // pred_region
      _
    $region13: #{tpu_custom_call.1} parent=1 // pred_fallthru
      _
    // Predicated region
    $region14: #{tpu_custom_call.1} parent=1 // pred_check
      _
    $region15: #{tpu_custom_call.1} parent=1 // pred_check_branch
      %25 = sbr.rel (0) target = $region17
    $region16: #{tpu_custom_call.1} parent=1 // pred_region
      _
    $region17: #{tpu_custom_call.1} parent=1 // pred_fallthru
      _
    // Predicated region
    $region18: #{tpu_custom_call.1} parent=1 // pred_check
      _
    $region19: #{tpu_custom_call.1} parent=1 // pred_check_branch
      %27 = sbr.rel (0) target = $region21
    $region20: #{tpu_custom_call.1} parent=1 // pred_region
      _
    $region21: #{tpu_custom_call.1} parent=1 // pred_fallthru
      _
    // Predicated region
    $region22: #{tpu_custom_call.1} parent=1 // pred_check
      _
    $region23: #{tpu_custom_call.1} parent=1 // pred_check_branch
      %29 = sbr.rel (0) target = $region25
    $region24: #{tpu_custom_call.1} parent=1 // pred_region
      %s31 = ssub.s32 16384, 16384
      %32 = vsyncadd [#allocation3], %s31
      %s33 = sshll.u32 [#allocation2], 4
      %s34 = int_to_ptr.vmem [resolvable:$true] %s33
      %39 = dma.hbm_to_vmem [thread:$0]  %s5, 16384, %s34, [#allocation3], 512, 512, 32
    $region25: #{tpu_custom_call.1} parent=1 // pred_fallthru
      _
    // Predicated region
    $region26: #{tpu_custom_call.1} parent=1 // pred_check
      _
    $region27: #{tpu_custom_call.1} parent=1 // pred_check_branch
      %41 = sbr.rel (0) target = $region29
    $region28: #{tpu_custom_call.1} parent=1 // pred_region
      _
    $region29: #{tpu_custom_call.1} parent=1 // pred_fallthru
      _
    // Predicated region
    $region30: #{tpu_custom_call.1} parent=1 // pred_check
      _
    $region31: #{tpu_custom_call.1} parent=1 // pred_check_branch
      %43 = sbr.rel (0) target = $region33
    $region32: #{tpu_custom_call.1} parent=1 // pred_region
      %s45 = ssub.s32 16384, 16384
      %46 = vsyncadd [#allocation5], %s45
      %s47 = sshll.u32 [#allocation4], 4
      %s48 = int_to_ptr.vmem [resolvable:$true] %s47
      %53 = dma.hbm_to_vmem [thread:$0]  %s7, 16384, %s48, [#allocation5], 256, 256, 16
    $region33: #{tpu_custom_call.1} parent=1 // pred_fallthru
      _
    // Predicated region
    $region34: #{tpu_custom_call.1} parent=1 // pred_check
      _
    $region35: #{tpu_custom_call.1} parent=1 // pred_check_branch
      %55 = sbr.rel (0) target = $region37
    $region36: #{tpu_custom_call.1} parent=1 // pred_region
      _
    $region37: #{tpu_custom_call.1} parent=1 // pred_fallthru
      _
    // Predicated region
    $region38: #{tpu_custom_call.1} parent=1 // pred_check
      _
    $region39: #{tpu_custom_call.1} parent=1 // pred_check_branch
      %57 = sbr.rel (0) target = $region41
    $region40: #{tpu_custom_call.1} parent=1 // pred_region
      _
    $region41: #{tpu_custom_call.1} parent=1 // pred_fallthru
      _
    // Predicated region
    $region42: #{tpu_custom_call.1} parent=1 // pred_check
      _
    $region43: #{tpu_custom_call.1} parent=1 // pred_check_branch
      %59 = sbr.rel (0) target = $region45
    $region44: #{tpu_custom_call.1} parent=1 // pred_region
      _
    $region45: #{tpu_custom_call.1} parent=1 // pred_fallthru
      _
    // Predicated region
    $region46: #{tpu_custom_call.1} parent=1 // pred_check
      _
    $region47: #{tpu_custom_call.1} parent=1 // pred_check_branch
      %61 = sbr.rel (0) target = $region49
    $region48: #{tpu_custom_call.1} parent=1 // pred_region
      %62 = dma.done [#allocation3], 16384
    $region49: #{tpu_custom_call.1} parent=1 // pred_fallthru
      _
    // Predicated region
    $region50: #{tpu_custom_call.1} parent=1 // pred_check
      _
    $region51: #{tpu_custom_call.1} parent=1 // pred_check_branch
      %64 = sbr.rel (0) target = $region53
    $region52: #{tpu_custom_call.1} parent=1 // pred_region
      %65 = dma.done [#allocation5], 16384
    $region53: #{tpu_custom_call.1} parent=1 // pred_fallthru
      _
    %v66 = vld [vmem:[%s0] sm:$0xff]
    %v67 = vld [vmem:[%s2] sm:$0xf]
    %vm68 = vcmp.gt.f32.partialorder %v67, 0.5
    %v69 = vsel %vm68, 1, 0
    %v70 = vlaneseq
    %v71 = vshrl.u32 %v70, 7
    %v72 = vsub.s32 2, %v71
    %v73 = vrot.slane %v69, %v72
    %vm74 = vcmp.eq.s32.totalorder %v73, 1
    %76 = vset.pattern.permute.xlu0 1
    %77 = vperm.xlu0 %76, %v66
    %v78 = vpop.permute.xlu0 %77
    %80 = vset.pattern.permute.xlu0 0
    %81 = vperm.xlu0 %80, %v66
    %v82 = vpop.permute.xlu0 %81
    %v84 = vsel %vm74, %v78, %v82
    %v85 = vlaneseq
    %v86 = vshrl.u32 %v85, 7
    %v87 = vsub.s32 0, %v86
    %v88 = vrot.slane %v67, %v87
    %v89 = vmul.f32 %v84, %v88
    %v90 = vand.u32 2147483647, %v89
    %vm91 = vcmp.le.f32.partialorder %v90, 0.7853982
    %vm92 = vcmp.lt.s32.totalorder %v89, 0
    %v93 = vand.u32 %v89, 2139095040
    %v94 = vshrl.u32 %v93, 23
    %v95 = vsub.s32 %v94, 127
    %v96 = vand.u32 2147483647, %v89
    %v97 = vand.u32 %v96, 8388607
    %v98 = vor.u32 %v97, 8388608
    %v99 = vsub.s32 0, %v98
    %v100 = vadd.s32 %v95, 1
    %vm101 = vcmp.gt.s32.totalorder %v100, 0
    %v102 = vsel %vm101, %v100, 0
    %v103 = vshrl.u32 %v102, 5
    %v104 = vand.u32 %v102, 31
    %v105 = vsub.s32 32, %v104
    %v106 = vshrl.u32 683565275, %v105
    %v107 = vshll.u32 683565275, %v104
    %v108 = vshrl.u32 2475754826, %v105
    %v109 = vor.u32 %v107, %v108
    %v110 = vshll.u32 2475754826, %v104
    %v111 = vshrl.u32 2131351028, %v105
    %v112 = vor.u32 %v110, %v111
    %v113 = vshll.u32 2131351028, %v104
    %v114 = vshrl.u32 2102212464, %v105
    %v115 = vor.u32 %v113, %v114
    %v116 = vshll.u32 2102212464, %v104
    %v117 = vshrl.u32 920167782, %v105
    %v118 = vor.u32 %v116, %v117
    %v119 = vshll.u32 920167782, %v104
    %v120 = vshrl.u32 1326507024, %v105
    %v121 = vor.u32 %v119, %v120
    %vm122 = vcmp.lt.s32.totalorder %v103, 1
    %vm123 = vcmp.lt.s32.totalorder %v103, 2
    %vm124 = vcmp.lt.s32.totalorder %v103, 3
    %vm125 = vcmp.lt.s32.totalorder %v103, 4
    %v126 = vsel %vm122, %v106, %v109
    %v127 = vsel %vm125, %v115, 2102212464
    %v128 = vsel %vm124, %v112, %v127
    %v129 = vsel %vm123, %v126, %v128
    %v130 = vsel %vm122, %v109, %v112
    %v131 = vsel %vm125, %v118, 920167782
    %v132 = vsel %vm124, %v115, %v131
    %v133 = vsel %vm123, %v130, %v132
    %v134 = vsel %vm122, %v112, %v115
    %v135 = vsel %vm125, %v121, 1326507024
    %v136 = vsel %vm124, %v118, %v135
    %v137 = vsel %vm123, %v134, %v136
    %v138 = vshll.u32 %v98, 8
    %v139 = vmul.u32.u64.compose %v138, %v137
    %v140 = vextract.low.u32 %v139
    %v141 = vextract.high.u32 %v139
    %v142 = vmul.u32.u64.compose %v138, %v133
    %v143 = vextract.low.u32 %v142
    %v144 = vextract.high.u32 %v142
    %v145 = vmul.u32 %v138, %v129
    %v146 = vadd.s32 %v141, %v143
    %vm147 = vc.u32 %v141, %v143
    %v148 = vadd.s32 %v144, 1
    %v149 = vsel %vm147, %v148, %v144
    %v150 = vadd.s32 %v145, %v149
    %v151 = vadd.s32 %v150, 536870912
    %v152 = vshrl.u32 %v151, 30
    %v153 = vshll.u32 %v152, 30
    %v154 = vsub.s32 %v150, %v153
    %vm155 = vcmp.lt.s32.totalorder %v154, 0
    %v156 = vsub.s32 0, %v154
    %v157 = vsel %vm155, %v156, %v154
    %v158 = vclz %v157
    %v159 = vsub.s32 %v158, 2
    %vm160 = vcmp.gt.s32.totalorder 0, %v159
    %v161 = vsel %vm160, 0, %v159
    %v162 = vsub.s32 32, %v161
    %v163 = vshll.u32 %v154, %v161
    %v164 = vshrl.u32 %v146, %v162
    %v165 = vor.u32 %v163, %v164
    %v166 = vsub.s32 4294967266, %v161
    %v167 = vadd.s32 %v166, 127
    %v168 = vshll.u32 %v167, 23
    %v169 = vor.u32 4788187, %v168
    %v170 = vand.u32 2147483647, %v169
    %v172 = vcvt.s32.f32 %v165
    %v173 = vmul.f32 %v172, %v170
    %v174 = vxor.u32 %v173, 2147483648
    %v175 = vsel %vm92, %v174, %v173
    %v176 = vsub.s32 4, %v152
    %v177 = vsel %vm92, %v176, %v152
    %v178 = vsel %vm91, %v89, %v175
    %v179 = vsel %vm91, 0, %v177
    %v180 = vcosq.f32.pop %v178
    %v181 = vsinq.f32.pop %v178
    %vm182 = vweird.f32 %v89
    %v183 = vand.u32 %v179, 3
    %vm184 = vcmp.lt.s32.totalorder %v183, 2
    %vm185 = vcmp.eq.s32.totalorder %v183, 0
    %v186 = vxor.u32 %v181, 2147483648
    %v187 = vsel %vm185, %v180, %v186
    %vm188 = vcmp.eq.s32.totalorder %v183, 2
    %v189 = vxor.u32 %v180, 2147483648
    %v190 = vsel %vm188, %v189, %v181
    %v191 = vsel %vm184, %v187, %v190
    %v192 = vsel %vm182, nan, %v191
    %v193 = vand.u32 2147483647, %v89
    %vm194 = vcmp.le.f32.partialorder %v193, 0.7853982
    %vm195 = vcmp.lt.s32.totalorder %v89, 0
    %v196 = vand.u32 %v89, 2139095040
    %v197 = vshrl.u32 %v196, 23
    %v198 = vsub.s32 %v197, 127
    %v199 = vand.u32 2147483647, %v89
    %v200 = vand.u32 %v199, 8388607
    %v201 = vor.u32 %v200, 8388608
    %v202 = vsub.s32 0, %v201
    %v203 = vadd.s32 %v198, 1
    %vm204 = vcmp.gt.s32.totalorder %v203, 0
    %v205 = vsel %vm204, %v203, 0
    %v206 = vshrl.u32 %v205, 5
    %v207 = vand.u32 %v205, 31
    %v208 = vsub.s32 32, %v207
    %v209 = vshrl.u32 683565275, %v208
    %v210 = vshll.u32 683565275, %v207
    %v211 = vshrl.u32 2475754826, %v208
    %v212 = vor.u32 %v210, %v211
    %v213 = vshll.u32 2475754826, %v207
    %v214 = vshrl.u32 2131351028, %v208
    %v215 = vor.u32 %v213, %v214
    %v216 = vshll.u32 2131351028, %v207
    %v217 = vshrl.u32 2102212464, %v208
    %v218 = vor.u32 %v216, %v217
    %v219 = vshll.u32 2102212464, %v207
    %v220 = vshrl.u32 920167782, %v208
    %v221 = vor.u32 %v219, %v220
    %v222 = vshll.u32 920167782, %v207
    %v223 = vshrl.u32 1326507024, %v208
    %v224 = vor.u32 %v222, %v223
    %vm225 = vcmp.lt.s32.totalorder %v206, 1
    %vm226 = vcmp.lt.s32.totalorder %v206, 2
    %vm227 = vcmp.lt.s32.totalorder %v206, 3
    %vm228 = vcmp.lt.s32.totalorder %v206, 4
    %v229 = vsel %vm225, %v209, %v212
    %v230 = vsel %vm228, %v218, 2102212464
    %v231 = vsel %vm227, %v215, %v230
    %v232 = vsel %vm226, %v229, %v231
    %v233 = vsel %vm225, %v212, %v215
    %v234 = vsel %vm228, %v221, 920167782
    %v235 = vsel %vm227, %v218, %v234
    %v236 = vsel %vm226, %v233, %v235
    %v237 = vsel %vm225, %v215, %v218
    %v238 = vsel %vm228, %v224, 1326507024
    %v239 = vsel %vm227, %v221, %v238
    %v240 = vsel %vm226, %v237, %v239
    %v241 = vshll.u32 %v201, 8
    %v242 = vmul.u32.u64.compose %v241, %v240
    %v243 = vextract.low.u32 %v242
    %v244 = vextract.high.u32 %v242
    %v245 = vmul.u32.u64.compose %v241, %v236
    %v246 = vextract.low.u32 %v245
    %v247 = vextract.high.u32 %v245
    %v248 = vmul.u32 %v241, %v232
    %v249 = vadd.s32 %v244, %v246
    %vm250 = vc.u32 %v244, %v246
    %v251 = vadd.s32 %v247, 1
    %v252 = vsel %vm250, %v251, %v247
    %v253 = vadd.s32 %v248, %v252
    %v254 = vadd.s32 %v253, 536870912
    %v255 = vshrl.u32 %v254, 30
    %v256 = vshll.u32 %v255, 30
    %v257 = vsub.s32 %v253, %v256
    %vm258 = vcmp.lt.s32.totalorder %v257, 0
    %v259 = vsub.s32 0, %v257
    %v260 = vsel %vm258, %v259, %v257
    %v261 = vclz %v260
    %v262 = vsub.s32 %v261, 2
    %vm263 = vcmp.gt.s32.totalorder 0, %v262
    %v264 = vsel %vm263, 0, %v262
    %v265 = vsub.s32 32, %v264
    %v266 = vshll.u32 %v257, %v264
    %v267 = vshrl.u32 %v249, %v265
    %v268 = vor.u32 %v266, %v267
    %v269 = vsub.s32 4294967266, %v264
    %v270 = vadd.s32 %v269, 127
    %v271 = vshll.u32 %v270, 23
    %v272 = vor.u32 4788187, %v271
    %v273 = vand.u32 2147483647, %v272
    %v275 = vcvt.s32.f32 %v268
    %v276 = vmul.f32 %v275, %v273
    %v277 = vxor.u32 %v276, 2147483648
    %v278 = vsel %vm195, %v277, %v276
    %v279 = vsub.s32 4, %v255
    %v280 = vsel %vm195, %v279, %v255
    %v281 = vsel %vm194, %v89, %v278
    %v282 = vsel %vm194, 0, %v280
    %v283 = vcosq.f32.pop %v281
    %v284 = vsinq.f32.pop %v281
    %vm285 = vweird.f32 %v89
    %v286 = vadd.s32 %v282, 3
    %v287 = vand.u32 %v286, 3
    %vm288 = vcmp.lt.s32.totalorder %v287, 2
    %vm289 = vcmp.eq.s32.totalorder %v287, 0
    %v290 = vxor.u32 %v284, 2147483648
    %v291 = vsel %vm289, %v283, %v290
    %vm292 = vcmp.eq.s32.totalorder %v287, 2
    %v293 = vxor.u32 %v283, 2147483648
    %v294 = vsel %vm292, %v293, %v284
    %v295 = vsel %vm288, %v291, %v294
    %v296 = vsel %vm285, nan, %v295
    %v297 = vlaneseq
    %v298 = vshrl.u32 %v297, 7
    %v299 = vsub.s32 1, %v298
    %v300 = vrot.slane %v69, %v299
    %vm301 = vcmp.eq.s32.totalorder %v300, 1
    %v302 = vsel %vm301, %v192, %v296
    %v303 = vlaneseq
    %v304 = vshrl.u32 %v303, 7
    %v305 = vsub.s32 3, %v304
    %v306 = vrot.slane %v69, %v305
    %vm307 = vcmp.eq.s32.totalorder %v306, 1
    %v308 = vsel %vm307, %v84, %v302
    %v309 = vld [vmem:[%s3] sm:$0xff]
    %v310 = vld [vmem:[%s3 + $0x8] sm:$0xff]
    %v311 = vld [vmem:[%s3 + $0x10] sm:$0xff]
    %v312 = vld [vmem:[%s3 + $0x18] sm:$0xff]
    %v313 = vld [vmem:[%s3 + $0x20] sm:$0xff]
    %v314 = vld [vmem:[%s3 + $0x28] sm:$0xff]
    %v315 = vld [vmem:[%s3 + $0x30] sm:$0xff]
    %v316 = vld [vmem:[%s3 + $0x38] sm:$0xff]
    %v317 = vld [vmem:[%s4] sm:$0x3]
    %v319 = vlaneseq
    %v320 = vshrl.u32 %v319, 7
    %v321 = vsub.s32 0, %v320
    %v322 = vrot.slane %v317, %v321
    %v323 = vlaneseq
    %v324 = vshrl.u32 %v323, 7
    %v325 = vsub.s32 1, %v324
    %v326 = vrot.slane %v317, %v325
    %vm329 = vcmask 261120
    %v331 = vsel %vm329, %v308, 0
    %333 = vmatprep.subr.mxu0 %v310
    %334 = vmatpush1.msra.mxu0 %v309
    %335 = vmatprep.subr.mxu0 %v312
    %336 = vmatpush1.msra.mxu0 %v311
    %337 = vmatprep.subr.mxu0 %v314
    %338 = vmatpush1.msra.mxu0 %v313
    %339 = vmatprep.subr.mxu0 %v316
    %340 = vmatpush1.msra.mxu0 %v315
    %341 = vmatprep.subr.mxu0 0.0
    %342 = vmatpush1.msra.mxu0 0.0
    %343 = vmatprep.subr.mxu0 0.0
    %344 = vmatpush1.msra.mxu0 0.0
    %345 = vmatprep.subr.mxu0 0.0
    %346 = vmatpush1.msra.mxu0 0.0
    %347 = vmatprep.subr.mxu0 0.0
    %348 = vmatpush1.msra.mxu0 0.0
    %349 = vmatprep.subr.mxu0 0.0
    %350 = vmatpush1.msra.mxu0 0.0
    %351 = vmatprep.subr.mxu0 0.0
    %352 = vmatpush1.msra.mxu0 0.0
    %353 = vmatprep.subr.mxu0 0.0
    %354 = vmatpush1.msra.mxu0 0.0
    %355 = vmatprep.subr.mxu0 0.0
    %356 = vmatpush1.msra.mxu0 0.0
    %357 = vmatprep.subr.mxu0 0.0
    %358 = vmatpush1.msra.mxu0 0.0
    %359 = vmatprep.subr.mxu0 0.0
    %360 = vmatpush1.msra.mxu0 0.0
    %361 = vmatprep.subr.mxu0 0.0
    %362 = vmatpush1.msra.mxu0 0.0
    %363 = vmatprep.subr.mxu0 0.0
    %364 = vmatpush1.msra.mxu0 0.0
    %365 = vmatprep.subr.mxu0 0.0
    %366 = vmatpush1.msra.mxu0 0.0
    %367 = vmatprep.subr.mxu0 0.0
    %368 = vmatpush1.msra.mxu0 0.0
    %369 = vmatprep.subr.mxu0 0.0
    %370 = vmatpush1.msra.mxu0 0.0
    %371 = vmatprep.subr.mxu0 0.0
    %372 = vmatpush1.msra.mxu0 0.0
    %373 = vmatprep.subr.mxu0 0.0
    %374 = vmatpush1.msra.mxu0 0.0
    %375 = vmatprep.subr.mxu0 0.0
    %376 = vmatpush1.msra.mxu0 0.0
    %377 = vmatprep.subr.mxu0 0.0
    %378 = vmatpush1.msra.mxu0 0.0
    %379 = vmatprep.subr.mxu0 0.0
    %380 = vmatpush1.msra.mxu0 0.0
    %381 = vmatprep.subr.mxu0 0.0
    %382 = vmatpush1.msra.mxu0 0.0
    %383 = vmatprep.subr.mxu0 0.0
    %384 = vmatpush1.msra.mxu0 0.0
    %385 = vmatprep.subr.mxu0 0.0
    %386 = vmatpush1.msra.mxu0 0.0
    %387 = vmatprep.subr.mxu0 0.0
    %388 = vmatpush1.msra.mxu0 0.0
    %389 = vmatprep.subr.mxu0 0.0
    %390 = vmatpush1.msra.mxu0 0.0
    %391 = vmatprep.subr.mxu0 0.0
    %392 = vmatpush1.msra.mxu0 0.0
    %393 = vmatprep.subr.mxu0 0.0
    %394 = vmatpush1.msra.mxu0 0.0
    %395 = vmatprep.subr.mxu0 0.0
    %396 = vmatpush1.msra.mxu0 0.0
    %397 = vmatprep.mubr.f32.mxu0 0.0
    %398 = vmatmul.mubr.f32.gmra.mrb[0].mxu0 %v331
    %v399 = vpop.f32.mrb[0].mxu0
    %v400 = vadd.f32 %v322, %v399
    %v401 = vpop.f32.mrb[0].mxu0
    %v402 = vadd.f32 %v326, %v401
    %403 = vdwg.mxu0
    %v404 = vmax.f32 %v400, 0.0
    %v405 = vmax.f32 %v402, 0.0
    %v406 = vld [vmem:[#allocation2] sm:$0xff]
    %v407 = vld [vmem:[#allocation2 + $0x8] sm:$0xff]
    %v408 = vld [vmem:[#allocation2 + $0x10] sm:$0xff]
    %v409 = vld [vmem:[#allocation2 + $0x18] sm:$0xff]
    %v410 = vld [vmem:[#allocation2 + $0x20] sm:$0xff]
    %v411 = vld [vmem:[#allocation2 + $0x28] sm:$0xff]
    %v412 = vld [vmem:[#allocation2 + $0x30] sm:$0xff]
    %v413 = vld [vmem:[#allocation2 + $0x38] sm:$0xff]
    %v414 = vld [vmem:[#allocation2 + $0x40] sm:$0xff]
    %v415 = vld [vmem:[#allocation2 + $0x48] sm:$0xff]
    %v416 = vld [vmem:[#allocation2 + $0x50] sm:$0xff]
    %v417 = vld [vmem:[#allocation2 + $0x58] sm:$0xff]
    %v418 = vld [vmem:[#allocation2 + $0x60] sm:$0xff]
    %v419 = vld [vmem:[#allocation2 + $0x68] sm:$0xff]
    %v420 = vld [vmem:[#allocation2 + $0x70] sm:$0xff]
    %v421 = vld [vmem:[#allocation2 + $0x78] sm:$0xff]
    %v422 = vld [vmem:[#allocation2 + $0x80] sm:$0xff]
    %v423 = vld [vmem:[#allocation2 + $0x88] sm:$0xff]
    %v424 = vld [vmem:[#allocation2 + $0x90] sm:$0xff]
    %v425 = vld [vmem:[#allocation2 + $0x98] sm:$0xff]
    %v426 = vld [vmem:[#allocation2 + $0xa0] sm:$0xff]
    %v427 = vld [vmem:[#allocation2 + $0xa8] sm:$0xff]
    %v428 = vld [vmem:[#allocation2 + $0xb0] sm:$0xff]
    %v429 = vld [vmem:[#allocation2 + $0xb8] sm:$0xff]
    %v430 = vld [vmem:[#allocation2 + $0xc0] sm:$0xff]
    %v431 = vld [vmem:[#allocation2 + $0xc8] sm:$0xff]
    %v432 = vld [vmem:[#allocation2 + $0xd0] sm:$0xff]
    %v433 = vld [vmem:[#allocation2 + $0xd8] sm:$0xff]
    %v434 = vld [vmem:[#allocation2 + $0xe0] sm:$0xff]
    %v435 = vld [vmem:[#allocation2 + $0xe8] sm:$0xff]
    %v436 = vld [vmem:[#allocation2 + $0xf0] sm:$0xff]
    %v437 = vld [vmem:[#allocation2 + $0xf8] sm:$0xff]
    %v438 = vld [vmem:[#allocation2 + $0x100] sm:$0xff]
    %v439 = vld [vmem:[#allocation2 + $0x108] sm:$0xff]
    %v440 = vld [vmem:[#allocation2 + $0x110] sm:$0xff]
    %v441 = vld [vmem:[#allocation2 + $0x118] sm:$0xff]
    %v442 = vld [vmem:[#allocation2 + $0x120] sm:$0xff]
    %v443 = vld [vmem:[#allocation2 + $0x128] sm:$0xff]
    %v444 = vld [vmem:[#allocation2 + $0x130] sm:$0xff]
    %v445 = vld [vmem:[#allocation2 + $0x138] sm:$0xff]
    %v446 = vld [vmem:[#allocation2 + $0x140] sm:$0xff]
    %v447 = vld [vmem:[#allocation2 + $0x148] sm:$0xff]
    %v448 = vld [vmem:[#allocation2 + $0x150] sm:$0xff]
    %v449 = vld [vmem:[#allocation2 + $0x158] sm:$0xff]
    %v450 = vld [vmem:[#allocation2 + $0x160] sm:$0xff]
    %v451 = vld [vmem:[#allocation2 + $0x168] sm:$0xff]
    %v452 = vld [vmem:[#allocation2 + $0x170] sm:$0xff]
    %v453 = vld [vmem:[#allocation2 + $0x178] sm:$0xff]
    %v454 = vld [vmem:[#allocation2 + $0x180] sm:$0xff]
    %v455 = vld [vmem:[#allocation2 + $0x188] sm:$0xff]
    %v456 = vld [vmem:[#allocation2 + $0x190] sm:$0xff]
    %v457 = vld [vmem:[#allocation2 + $0x198] sm:$0xff]
    %v458 = vld [vmem:[#allocation2 + $0x1a0] sm:$0xff]
    %v459 = vld [vmem:[#allocation2 + $0x1a8] sm:$0xff]
    %v460 = vld [vmem:[#allocation2 + $0x1b0] sm:$0xff]
    %v461 = vld [vmem:[#allocation2 + $0x1b8] sm:$0xff]
    %v462 = vld [vmem:[#allocation2 + $0x1c0] sm:$0xff]
    %v463 = vld [vmem:[#allocation2 + $0x1c8] sm:$0xff]
    %v464 = vld [vmem:[#allocation2 + $0x1d0] sm:$0xff]
    %v465 = vld [vmem:[#allocation2 + $0x1d8] sm:$0xff]
    %v466 = vld [vmem:[#allocation2 + $0x1e0] sm:$0xff]
    %v467 = vld [vmem:[#allocation2 + $0x1e8] sm:$0xff]
    %v468 = vld [vmem:[#allocation2 + $0x1f0] sm:$0xff]
    %v469 = vld [vmem:[#allocation2 + $0x1f8] sm:$0xff]
    %v470 = vld [vmem:[#allocation2 + $0x200] sm:$0xff]
    %v471 = vld [vmem:[#allocation2 + $0x208] sm:$0xff]
    %v472 = vld [vmem:[#allocation2 + $0x210] sm:$0xff]
    %v473 = vld [vmem:[#allocation2 + $0x218] sm:$0xff]
    %v474 = vld [vmem:[#allocation2 + $0x220] sm:$0xff]
    %v475 = vld [vmem:[#allocation2 + $0x228] sm:$0xff]
    %v476 = vld [vmem:[#allocation2 + $0x230] sm:$0xff]
    %v477 = vld [vmem:[#allocation2 + $0x238] sm:$0xff]
    %v478 = vld [vmem:[#allocation2 + $0x240] sm:$0xff]
    %v479 = vld [vmem:[#allocation2 + $0x248] sm:$0xff]
    %v480 = vld [vmem:[#allocation2 + $0x250] sm:$0xff]
    %v481 = vld [vmem:[#allocation2 + $0x258] sm:$0xff]
    %v482 = vld [vmem:[#allocation2 + $0x260] sm:$0xff]
    %v483 = vld [vmem:[#allocation2 + $0x268] sm:$0xff]
    %v484 = vld [vmem:[#allocation2 + $0x270] sm:$0xff]
    %v485 = vld [vmem:[#allocation2 + $0x278] sm:$0xff]
    %v486 = vld [vmem:[#allocation2 + $0x280] sm:$0xff]
    %v487 = vld [vmem:[#allocation2 + $0x288] sm:$0xff]
    %v488 = vld [vmem:[#allocation2 + $0x290] sm:$0xff]
    %v489 = vld [vmem:[#allocation2 + $0x298] sm:$0xff]
    %v490 = vld [vmem:[#allocation2 + $0x2a0] sm:$0xff]
    %v491 = vld [vmem:[#allocation2 + $0x2a8] sm:$0xff]
    %v492 = vld [vmem:[#allocation2 + $0x2b0] sm:$0xff]
    %v493 = vld [vmem:[#allocation2 + $0x2b8] sm:$0xff]
    %v494 = vld [vmem:[#allocation2 + $0x2c0] sm:$0xff]
    %v495 = vld [vmem:[#allocation2 + $0x2c8] sm:$0xff]
    %v496 = vld [vmem:[#allocation2 + $0x2d0] sm:$0xff]
    %v497 = vld [vmem:[#allocation2 + $0x2d8] sm:$0xff]
    %v498 = vld [vmem:[#allocation2 + $0x2e0] sm:$0xff]
    %v499 = vld [vmem:[#allocation2 + $0x2e8] sm:$0xff]
    %v500 = vld [vmem:[#allocation2 + $0x2f0] sm:$0xff]
    %v501 = vld [vmem:[#allocation2 + $0x2f8] sm:$0xff]
    %v502 = vld [vmem:[#allocation2 + $0x300] sm:$0xff]
    %v503 = vld [vmem:[#allocation2 + $0x308] sm:$0xff]
    %v504 = vld [vmem:[#allocation2 + $0x310] sm:$0xff]
    %v505 = vld [vmem:[#allocation2 + $0x318] sm:$0xff]
    %v506 = vld [vmem:[#allocation2 + $0x320] sm:$0xff]
    %v507 = vld [vmem:[#allocation2 + $0x328] sm:$0xff]
    %v508 = vld [vmem:[#allocation2 + $0x330] sm:$0xff]
    %v509 = vld [vmem:[#allocation2 + $0x338] sm:$0xff]
    %v510 = vld [vmem:[#allocation2 + $0x340] sm:$0xff]
    %v511 = vld [vmem:[#allocation2 + $0x348] sm:$0xff]
    %v512 = vld [vmem:[#allocation2 + $0x350] sm:$0xff]
    %v513 = vld [vmem:[#allocation2 + $0x358] sm:$0xff]
    %v514 = vld [vmem:[#allocation2 + $0x360] sm:$0xff]
    %v515 = vld [vmem:[#allocation2 + $0x368] sm:$0xff]
    %v516 = vld [vmem:[#allocation2 + $0x370] sm:$0xff]
    %v517 = vld [vmem:[#allocation2 + $0x378] sm:$0xff]
    %v518 = vld [vmem:[#allocation2 + $0x380] sm:$0xff]
    %v519 = vld [vmem:[#allocation2 + $0x388] sm:$0xff]
    %v520 = vld [vmem:[#allocation2 + $0x390] sm:$0xff]
    %v521 = vld [vmem:[#allocation2 + $0x398] sm:$0xff]
    %v522 = vld [vmem:[#allocation2 + $0x3a0] sm:$0xff]
    %v523 = vld [vmem:[#allocation2 + $0x3a8] sm:$0xff]
    %v524 = vld [vmem:[#allocation2 + $0x3b0] sm:$0xff]
    %v525 = vld [vmem:[#allocation2 + $0x3b8] sm:$0xff]
    %v526 = vld [vmem:[#allocation2 + $0x3c0] sm:$0xff]
    %v527 = vld [vmem:[#allocation2 + $0x3c8] sm:$0xff]
    %v528 = vld [vmem:[#allocation2 + $0x3d0] sm:$0xff]
    %v529 = vld [vmem:[#allocation2 + $0x3d8] sm:$0xff]
    %v530 = vld [vmem:[#allocation2 + $0x3e0] sm:$0xff]
    %v531 = vld [vmem:[#allocation2 + $0x3e8] sm:$0xff]
    %v532 = vld [vmem:[#allocation2 + $0x3f0] sm:$0xff]
    %v533 = vld [vmem:[#allocation2 + $0x3f8] sm:$0xff]
    %v534 = vld [vmem:[%s6] sm:$0xf]
    %v536 = vlaneseq
    %v537 = vshrl.u32 %v536, 7
    %v538 = vsub.s32 0, %v537
    %v539 = vrot.slane %v534, %v538
    %v540 = vlaneseq
    %v541 = vshrl.u32 %v540, 7
    %v542 = vsub.s32 1, %v541
    %v543 = vrot.slane %v534, %v542
    %v544 = vlaneseq
    %v545 = vshrl.u32 %v544, 7
    %v546 = vsub.s32 2, %v545
    %v547 = vrot.slane %v534, %v546
    %v548 = vlaneseq
    %v549 = vshrl.u32 %v548, 7
    %v550 = vsub.s32 3, %v549
    %v551 = vrot.slane %v534, %v550
    %556 = vmatprep.subr.mxu0 %v407
    %557 = vmatpush1.msra.mxu0 %v406
    %558 = vmatprep.subr.mxu0 %v411
    %559 = vmatpush1.msra.mxu0 %v410
    %560 = vmatprep.subr.mxu0 %v415
    %561 = vmatpush1.msra.mxu0 %v414
    %562 = vmatprep.subr.mxu0 %v419
    %563 = vmatpush1.msra.mxu0 %v418
    %564 = vmatprep.subr.mxu0 %v423
    %565 = vmatpush1.msra.mxu0 %v422
    %566 = vmatprep.subr.mxu0 %v427
    %567 = vmatpush1.msra.mxu0 %v426
    %568 = vmatprep.subr.mxu0 %v431
    %569 = vmatpush1.msra.mxu0 %v430
    %570 = vmatprep.subr.mxu0 %v435
    %571 = vmatpush1.msra.mxu0 %v434
    %572 = vmatprep.subr.mxu0 %v439
    %573 = vmatpush1.msra.mxu0 %v438
    %574 = vmatprep.subr.mxu0 %v443
    %575 = vmatpush1.msra.mxu0 %v442
    %576 = vmatprep.subr.mxu0 %v447
    %577 = vmatpush1.msra.mxu0 %v446
    %578 = vmatprep.subr.mxu0 %v451
    %579 = vmatpush1.msra.mxu0 %v450
    %580 = vmatprep.subr.mxu0 %v455
    %581 = vmatpush1.msra.mxu0 %v454
    %582 = vmatprep.subr.mxu0 %v459
    %583 = vmatpush1.msra.mxu0 %v458
    %584 = vmatprep.subr.mxu0 %v463
    %585 = vmatpush1.msra.mxu0 %v462
    %586 = vmatprep.subr.mxu0 %v467
    %587 = vmatpush1.msra.mxu0 %v466
    %588 = vmatprep.subr.mxu0 %v471
    %589 = vmatpush1.msra.mxu0 %v470
    %590 = vmatprep.subr.mxu0 %v475
    %591 = vmatpush1.msra.mxu0 %v474
    %592 = vmatprep.subr.mxu0 %v479
    %593 = vmatpush1.msra.mxu0 %v478
    %594 = vmatprep.subr.mxu0 %v483
    %595 = vmatpush1.msra.mxu0 %v482
    %596 = vmatprep.subr.mxu0 %v487
    %597 = vmatpush1.msra.mxu0 %v486
    %598 = vmatprep.subr.mxu0 %v491
    %599 = vmatpush1.msra.mxu0 %v490
    %600 = vmatprep.subr.mxu0 %v495
    %601 = vmatpush1.msra.mxu0 %v494
    %602 = vmatprep.subr.mxu0 %v499
    %603 = vmatpush1.msra.mxu0 %v498
    %604 = vmatprep.subr.mxu0 %v503
    %605 = vmatpush1.msra.mxu0 %v502
    %606 = vmatprep.subr.mxu0 %v507
    %607 = vmatpush1.msra.mxu0 %v506
    %608 = vmatprep.subr.mxu0 %v511
    %609 = vmatpush1.msra.mxu0 %v510
    %610 = vmatprep.subr.mxu0 %v515
    %611 = vmatpush1.msra.mxu0 %v514
    %612 = vmatprep.subr.mxu0 %v519
    %613 = vmatpush1.msra.mxu0 %v518
    %614 = vmatprep.subr.mxu0 %v523
    %615 = vmatpush1.msra.mxu0 %v522
    %616 = vmatprep.subr.mxu0 %v527
    %617 = vmatpush1.msra.mxu0 %v526
    %618 = vmatprep.subr.mxu0 %v531
    %619 = vmatpush1.msra.mxu0 %v530
    %620 = vmatprep.mubr.f32.mxu0 %v405
    %621 = vmatmul.mubr.f32.gmra.mrb[0].mxu0 %v404
    %v622 = vpop.f32.mrb[0].mxu0
    %v623 = vadd.f32 %v539, %v622
    %v624 = vpop.f32.mrb[0].mxu0
    %v625 = vadd.f32 %v543, %v624
    %626 = vdwg.mxu0
    %627 = vmatprep.subr.mxu0 %v409
    %628 = vmatpush1.msra.mxu0 %v408
    %629 = vmatprep.subr.mxu0 %v413
    %630 = vmatpush1.msra.mxu0 %v412
    %631 = vmatprep.subr.mxu0 %v417
    %632 = vmatpush1.msra.mxu0 %v416
    %633 = vmatprep.subr.mxu0 %v421
    %634 = vmatpush1.msra.mxu0 %v420
    %635 = vmatprep.subr.mxu0 %v425
    %636 = vmatpush1.msra.mxu0 %v424
    %637 = vmatprep.subr.mxu0 %v429
    %638 = vmatpush1.msra.mxu0 %v428
    %639 = vmatprep.subr.mxu0 %v433
    %640 = vmatpush1.msra.mxu0 %v432
    %641 = vmatprep.subr.mxu0 %v437
    %642 = vmatpush1.msra.mxu0 %v436
    %643 = vmatprep.subr.mxu0 %v441
    %644 = vmatpush1.msra.mxu0 %v440
    %645 = vmatprep.subr.mxu0 %v445
    %646 = vmatpush1.msra.mxu0 %v444
    %647 = vmatprep.subr.mxu0 %v449
    %648 = vmatpush1.msra.mxu0 %v448
    %649 = vmatprep.subr.mxu0 %v453
    %650 = vmatpush1.msra.mxu0 %v452
    %651 = vmatprep.subr.mxu0 %v457
    %652 = vmatpush1.msra.mxu0 %v456
    %653 = vmatprep.subr.mxu0 %v461
    %654 = vmatpush1.msra.mxu0 %v460
    %655 = vmatprep.subr.mxu0 %v465
    %656 = vmatpush1.msra.mxu0 %v464
    %657 = vmatprep.subr.mxu0 %v469
    %658 = vmatpush1.msra.mxu0 %v468
    %659 = vmatprep.subr.mxu0 %v473
    %660 = vmatpush1.msra.mxu0 %v472
    %661 = vmatprep.subr.mxu0 %v477
    %662 = vmatpush1.msra.mxu0 %v476
    %663 = vmatprep.subr.mxu0 %v481
    %664 = vmatpush1.msra.mxu0 %v480
    %665 = vmatprep.subr.mxu0 %v485
    %666 = vmatpush1.msra.mxu0 %v484
    %667 = vmatprep.subr.mxu0 %v489
    %668 = vmatpush1.msra.mxu0 %v488
    %669 = vmatprep.subr.mxu0 %v493
    %670 = vmatpush1.msra.mxu0 %v492
    %671 = vmatprep.subr.mxu0 %v497
    %672 = vmatpush1.msra.mxu0 %v496
    %673 = vmatprep.subr.mxu0 %v501
    %674 = vmatpush1.msra.mxu0 %v500
    %675 = vmatprep.subr.mxu0 %v505
    %676 = vmatpush1.msra.mxu0 %v504
    %677 = vmatprep.subr.mxu0 %v509
    %678 = vmatpush1.msra.mxu0 %v508
    %679 = vmatprep.subr.mxu0 %v513
    %680 = vmatpush1.msra.mxu0 %v512
    %681 = vmatprep.subr.mxu0 %v517
    %682 = vmatpush1.msra.mxu0 %v516
    %683 = vmatprep.subr.mxu0 %v521
    %684 = vmatpush1.msra.mxu0 %v520
    %685 = vmatprep.subr.mxu0 %v525
    %686 = vmatpush1.msra.mxu0 %v524
    %687 = vmatprep.subr.mxu0 %v529
    %688 = vmatpush1.msra.mxu0 %v528
    %689 = vmatprep.subr.mxu0 %v533
    %690 = vmatpush1.msra.mxu0 %v532
    %691 = vmatprep.mubr.f32.mxu0 %v405
    %692 = vmatmul.mubr.f32.gmra.mrb[0].mxu0 %v404
    %v693 = vpop.f32.mrb[0].mxu0
    %v694 = vadd.f32 %v547, %v693
    %v695 = vpop.f32.mrb[0].mxu0
    %v696 = vadd.f32 %v551, %v695
    %697 = vdwg.mxu0
    %v698 = vmax.f32 %v623, 0.0
    %v699 = vmax.f32 %v625, 0.0
    %v700 = vmax.f32 %v694, 0.0
    %v701 = vmax.f32 %v696, 0.0
    %v702 = vld [vmem:[#allocation4] sm:$0xff]
    %v703 = vld [vmem:[#allocation4 + $0x8] sm:$0xff]
    %v704 = vld [vmem:[#allocation4 + $0x10] sm:$0xff]
    %v705 = vld [vmem:[#allocation4 + $0x18] sm:$0xff]
    %v706 = vld [vmem:[#allocation4 + $0x20] sm:$0xff]
    %v707 = vld [vmem:[#allocation4 + $0x28] sm:$0xff]
    %v708 = vld [vmem:[#allocation4 + $0x30] sm:$0xff]
    %v709 = vld [vmem:[#allocation4 + $0x38] sm:$0xff]
    %v710 = vld [vmem:[#allocation4 + $0x40] sm:$0xff]
    %v711 = vld [vmem:[#allocation4 + $0x48] sm:$0xff]
    %v712 = vld [vmem:[#allocation4 + $0x50] sm:$0xff]
    %v713 = vld [vmem:[#allocation4 + $0x58] sm:$0xff]
    %v714 = vld [vmem:[#allocation4 + $0x60] sm:$0xff]
    %v715 = vld [vmem:[#allocation4 + $0x68] sm:$0xff]
    %v716 = vld [vmem:[#allocation4 + $0x70] sm:$0xff]
    %v717 = vld [vmem:[#allocation4 + $0x78] sm:$0xff]
    %v718 = vld [vmem:[#allocation4 + $0x80] sm:$0xff]
    %v719 = vld [vmem:[#allocation4 + $0x88] sm:$0xff]
    %v720 = vld [vmem:[#allocation4 + $0x90] sm:$0xff]
    %v721 = vld [vmem:[#allocation4 + $0x98] sm:$0xff]
    %v722 = vld [vmem:[#allocation4 + $0xa0] sm:$0xff]
    %v723 = vld [vmem:[#allocation4 + $0xa8] sm:$0xff]
    %v724 = vld [vmem:[#allocation4 + $0xb0] sm:$0xff]
    %v725 = vld [vmem:[#allocation4 + $0xb8] sm:$0xff]
    %v726 = vld [vmem:[#allocation4 + $0xc0] sm:$0xff]
    %v727 = vld [vmem:[#allocation4 + $0xc8] sm:$0xff]
    %v728 = vld [vmem:[#allocation4 + $0xd0] sm:$0xff]
    %v729 = vld [vmem:[#allocation4 + $0xd8] sm:$0xff]
    %v730 = vld [vmem:[#allocation4 + $0xe0] sm:$0xff]
    %v731 = vld [vmem:[#allocation4 + $0xe8] sm:$0xff]
    %v732 = vld [vmem:[#allocation4 + $0xf0] sm:$0xff]
    %v733 = vld [vmem:[#allocation4 + $0xf8] sm:$0xff]
    %v734 = vld [vmem:[#allocation4 + $0x100] sm:$0xff]
    %v735 = vld [vmem:[#allocation4 + $0x108] sm:$0xff]
    %v736 = vld [vmem:[#allocation4 + $0x110] sm:$0xff]
    %v737 = vld [vmem:[#allocation4 + $0x118] sm:$0xff]
    %v738 = vld [vmem:[#allocation4 + $0x120] sm:$0xff]
    %v739 = vld [vmem:[#allocation4 + $0x128] sm:$0xff]
    %v740 = vld [vmem:[#allocation4 + $0x130] sm:$0xff]
    %v741 = vld [vmem:[#allocation4 + $0x138] sm:$0xff]
    %v742 = vld [vmem:[#allocation4 + $0x140] sm:$0xff]
    %v743 = vld [vmem:[#allocation4 + $0x148] sm:$0xff]
    %v744 = vld [vmem:[#allocation4 + $0x150] sm:$0xff]
    %v745 = vld [vmem:[#allocation4 + $0x158] sm:$0xff]
    %v746 = vld [vmem:[#allocation4 + $0x160] sm:$0xff]
    %v747 = vld [vmem:[#allocation4 + $0x168] sm:$0xff]
    %v748 = vld [vmem:[#allocation4 + $0x170] sm:$0xff]
    %v749 = vld [vmem:[#allocation4 + $0x178] sm:$0xff]
    %v750 = vld [vmem:[#allocation4 + $0x180] sm:$0xff]
    %v751 = vld [vmem:[#allocation4 + $0x188] sm:$0xff]
    %v752 = vld [vmem:[#allocation4 + $0x190] sm:$0xff]
    %v753 = vld [vmem:[#allocation4 + $0x198] sm:$0xff]
    %v754 = vld [vmem:[#allocation4 + $0x1a0] sm:$0xff]
    %v755 = vld [vmem:[#allocation4 + $0x1a8] sm:$0xff]
    %v756 = vld [vmem:[#allocation4 + $0x1b0] sm:$0xff]
    %v757 = vld [vmem:[#allocation4 + $0x1b8] sm:$0xff]
    %v758 = vld [vmem:[#allocation4 + $0x1c0] sm:$0xff]
    %v759 = vld [vmem:[#allocation4 + $0x1c8] sm:$0xff]
    %v760 = vld [vmem:[#allocation4 + $0x1d0] sm:$0xff]
    %v761 = vld [vmem:[#allocation4 + $0x1d8] sm:$0xff]
    %v762 = vld [vmem:[#allocation4 + $0x1e0] sm:$0xff]
    %v763 = vld [vmem:[#allocation4 + $0x1e8] sm:$0xff]
    %v764 = vld [vmem:[#allocation4 + $0x1f0] sm:$0xff]
    %v765 = vld [vmem:[#allocation4 + $0x1f8] sm:$0xff]
    %v766 = vld [vmem:[#allocation4 + $0x200] sm:$0xff]
    %v767 = vld [vmem:[#allocation4 + $0x208] sm:$0xff]
    %v768 = vld [vmem:[#allocation4 + $0x210] sm:$0xff]
    %v769 = vld [vmem:[#allocation4 + $0x218] sm:$0xff]
    %v770 = vld [vmem:[#allocation4 + $0x220] sm:$0xff]
    %v771 = vld [vmem:[#allocation4 + $0x228] sm:$0xff]
    %v772 = vld [vmem:[#allocation4 + $0x230] sm:$0xff]
    %v773 = vld [vmem:[#allocation4 + $0x238] sm:$0xff]
    %v774 = vld [vmem:[#allocation4 + $0x240] sm:$0xff]
    %v775 = vld [vmem:[#allocation4 + $0x248] sm:$0xff]
    %v776 = vld [vmem:[#allocation4 + $0x250] sm:$0xff]
    %v777 = vld [vmem:[#allocation4 + $0x258] sm:$0xff]
    %v778 = vld [vmem:[#allocation4 + $0x260] sm:$0xff]
    %v779 = vld [vmem:[#allocation4 + $0x268] sm:$0xff]
    %v780 = vld [vmem:[#allocation4 + $0x270] sm:$0xff]
    %v781 = vld [vmem:[#allocation4 + $0x278] sm:$0xff]
    %v782 = vld [vmem:[#allocation4 + $0x280] sm:$0xff]
    %v783 = vld [vmem:[#allocation4 + $0x288] sm:$0xff]
    %v784 = vld [vmem:[#allocation4 + $0x290] sm:$0xff]
    %v785 = vld [vmem:[#allocation4 + $0x298] sm:$0xff]
    %v786 = vld [vmem:[#allocation4 + $0x2a0] sm:$0xff]
    %v787 = vld [vmem:[#allocation4 + $0x2a8] sm:$0xff]
    %v788 = vld [vmem:[#allocation4 + $0x2b0] sm:$0xff]
    %v789 = vld [vmem:[#allocation4 + $0x2b8] sm:$0xff]
    %v790 = vld [vmem:[#allocation4 + $0x2c0] sm:$0xff]
    %v791 = vld [vmem:[#allocation4 + $0x2c8] sm:$0xff]
    %v792 = vld [vmem:[#allocation4 + $0x2d0] sm:$0xff]
    %v793 = vld [vmem:[#allocation4 + $0x2d8] sm:$0xff]
    %v794 = vld [vmem:[#allocation4 + $0x2e0] sm:$0xff]
    %v795 = vld [vmem:[#allocation4 + $0x2e8] sm:$0xff]
    %v796 = vld [vmem:[#allocation4 + $0x2f0] sm:$0xff]
    %v797 = vld [vmem:[#allocation4 + $0x2f8] sm:$0xff]
    %v798 = vld [vmem:[#allocation4 + $0x300] sm:$0xff]
    %v799 = vld [vmem:[#allocation4 + $0x308] sm:$0xff]
    %v800 = vld [vmem:[#allocation4 + $0x310] sm:$0xff]
    %v801 = vld [vmem:[#allocation4 + $0x318] sm:$0xff]
    %v802 = vld [vmem:[#allocation4 + $0x320] sm:$0xff]
    %v803 = vld [vmem:[#allocation4 + $0x328] sm:$0xff]
    %v804 = vld [vmem:[#allocation4 + $0x330] sm:$0xff]
    %v805 = vld [vmem:[#allocation4 + $0x338] sm:$0xff]
    %v806 = vld [vmem:[#allocation4 + $0x340] sm:$0xff]
    %v807 = vld [vmem:[#allocation4 + $0x348] sm:$0xff]
    %v808 = vld [vmem:[#allocation4 + $0x350] sm:$0xff]
    %v809 = vld [vmem:[#allocation4 + $0x358] sm:$0xff]
    %v810 = vld [vmem:[#allocation4 + $0x360] sm:$0xff]
    %v811 = vld [vmem:[#allocation4 + $0x368] sm:$0xff]
    %v812 = vld [vmem:[#allocation4 + $0x370] sm:$0xff]
    %v813 = vld [vmem:[#allocation4 + $0x378] sm:$0xff]
    %v814 = vld [vmem:[#allocation4 + $0x380] sm:$0xff]
    %v815 = vld [vmem:[#allocation4 + $0x388] sm:$0xff]
    %v816 = vld [vmem:[#allocation4 + $0x390] sm:$0xff]
    %v817 = vld [vmem:[#allocation4 + $0x398] sm:$0xff]
    %v818 = vld [vmem:[#allocation4 + $0x3a0] sm:$0xff]
    %v819 = vld [vmem:[#allocation4 + $0x3a8] sm:$0xff]
    %v820 = vld [vmem:[#allocation4 + $0x3b0] sm:$0xff]
    %v821 = vld [vmem:[#allocation4 + $0x3b8] sm:$0xff]
    %v822 = vld [vmem:[#allocation4 + $0x3c0] sm:$0xff]
    %v823 = vld [vmem:[#allocation4 + $0x3c8] sm:$0xff]
    %v824 = vld [vmem:[#allocation4 + $0x3d0] sm:$0xff]
    %v825 = vld [vmem:[#allocation4 + $0x3d8] sm:$0xff]
    %v826 = vld [vmem:[#allocation4 + $0x3e0] sm:$0xff]
    %v827 = vld [vmem:[#allocation4 + $0x3e8] sm:$0xff]
    %v828 = vld [vmem:[#allocation4 + $0x3f0] sm:$0xff]
    %v829 = vld [vmem:[#allocation4 + $0x3f8] sm:$0xff]
    %v830 = vld [vmem:[%s8] sm:$0x3]
    %v832 = vlaneseq
    %v833 = vshrl.u32 %v832, 7
    %v834 = vsub.s32 0, %v833
    %v835 = vrot.slane %v830, %v834
    %v836 = vlaneseq
    %v837 = vshrl.u32 %v836, 7
    %v838 = vsub.s32 1, %v837
    %v839 = vrot.slane %v830, %v838
    %842 = vmatprep.subr.mxu0 %v703
    %843 = vmatpush1.msra.mxu0 %v702
    %844 = vmatprep.subr.mxu0 %v705
    %845 = vmatpush1.msra.mxu0 %v704
    %846 = vmatprep.subr.mxu0 %v707
    %847 = vmatpush1.msra.mxu0 %v706
    %848 = vmatprep.subr.mxu0 %v709
    %849 = vmatpush1.msra.mxu0 %v708
    %850 = vmatprep.subr.mxu0 %v711
    %851 = vmatpush1.msra.mxu0 %v710
    %852 = vmatprep.subr.mxu0 %v713
    %853 = vmatpush1.msra.mxu0 %v712
    %854 = vmatprep.subr.mxu0 %v715
    %855 = vmatpush1.msra.mxu0 %v714
    %856 = vmatprep.subr.mxu0 %v717
    %857 = vmatpush1.msra.mxu0 %v716
    %858 = vmatprep.subr.mxu0 %v719
    %859 = vmatpush1.msra.mxu0 %v718
    %860 = vmatprep.subr.mxu0 %v721
    %861 = vmatpush1.msra.mxu0 %v720
    %862 = vmatprep.subr.mxu0 %v723
    %863 = vmatpush1.msra.mxu0 %v722
    %864 = vmatprep.subr.mxu0 %v725
    %865 = vmatpush1.msra.mxu0 %v724
    %866 = vmatprep.subr.mxu0 %v727
    %867 = vmatpush1.msra.mxu0 %v726
    %868 = vmatprep.subr.mxu0 %v729
    %869 = vmatpush1.msra.mxu0 %v728
    %870 = vmatprep.subr.mxu0 %v731
    %871 = vmatpush1.msra.mxu0 %v730
    %872 = vmatprep.subr.mxu0 %v733
    %873 = vmatpush1.msra.mxu0 %v732
    %874 = vmatprep.subr.mxu0 %v735
    %875 = vmatpush1.msra.mxu0 %v734
    %876 = vmatprep.subr.mxu0 %v737
    %877 = vmatpush1.msra.mxu0 %v736
    %878 = vmatprep.subr.mxu0 %v739
    %879 = vmatpush1.msra.mxu0 %v738
    %880 = vmatprep.subr.mxu0 %v741
    %881 = vmatpush1.msra.mxu0 %v740
    %882 = vmatprep.subr.mxu0 %v743
    %883 = vmatpush1.msra.mxu0 %v742
    %884 = vmatprep.subr.mxu0 %v745
    %885 = vmatpush1.msra.mxu0 %v744
    %886 = vmatprep.subr.mxu0 %v747
    %887 = vmatpush1.msra.mxu0 %v746
    %888 = vmatprep.subr.mxu0 %v749
    %889 = vmatpush1.msra.mxu0 %v748
    %890 = vmatprep.subr.mxu0 %v751
    %891 = vmatpush1.msra.mxu0 %v750
    %892 = vmatprep.subr.mxu0 %v753
    %893 = vmatpush1.msra.mxu0 %v752
    %894 = vmatprep.subr.mxu0 %v755
    %895 = vmatpush1.msra.mxu0 %v754
    %896 = vmatprep.subr.mxu0 %v757
    %897 = vmatpush1.msra.mxu0 %v756
    %898 = vmatprep.subr.mxu0 %v759
    %899 = vmatpush1.msra.mxu0 %v758
    %900 = vmatprep.subr.mxu0 %v761
    %901 = vmatpush1.msra.mxu0 %v760
    %902 = vmatprep.subr.mxu0 %v763
    %903 = vmatpush1.msra.mxu0 %v762
    %904 = vmatprep.subr.mxu0 %v765
    %905 = vmatpush1.msra.mxu0 %v764
    %906 = vmatprep.mubr.f32.mxu0 %v699
    %907 = vmatmul.mubr.f32.gmra.mrb[0].mxu0 %v698
    %v908 = vpop.f32.mrb[0].mxu0
    %v909 = vadd.f32 %v835, %v908
    %v910 = vpop.f32.mrb[0].mxu0
    %v911 = vadd.f32 %v839, %v910
    %912 = vdwg.mxu0
    %913 = vmatprep.subr.mxu0 %v767
    %914 = vmatpush1.msra.mxu0 %v766
    %915 = vmatprep.subr.mxu0 %v769
    %916 = vmatpush1.msra.mxu0 %v768
    %917 = vmatprep.subr.mxu0 %v771
    %918 = vmatpush1.msra.mxu0 %v770
    %919 = vmatprep.subr.mxu0 %v773
    %920 = vmatpush1.msra.mxu0 %v772
    %921 = vmatprep.subr.mxu0 %v775
    %922 = vmatpush1.msra.mxu0 %v774
    %923 = vmatprep.subr.mxu0 %v777
    %924 = vmatpush1.msra.mxu0 %v776
    %925 = vmatprep.subr.mxu0 %v779
    %926 = vmatpush1.msra.mxu0 %v778
    %927 = vmatprep.subr.mxu0 %v781
    %928 = vmatpush1.msra.mxu0 %v780
    %929 = vmatprep.subr.mxu0 %v783
    %930 = vmatpush1.msra.mxu0 %v782
    %931 = vmatprep.subr.mxu0 %v785
    %932 = vmatpush1.msra.mxu0 %v784
    %933 = vmatprep.subr.mxu0 %v787
    %934 = vmatpush1.msra.mxu0 %v786
    %935 = vmatprep.subr.mxu0 %v789
    %936 = vmatpush1.msra.mxu0 %v788
    %937 = vmatprep.subr.mxu0 %v791
    %938 = vmatpush1.msra.mxu0 %v790
    %939 = vmatprep.subr.mxu0 %v793
    %940 = vmatpush1.msra.mxu0 %v792
    %941 = vmatprep.subr.mxu0 %v795
    %942 = vmatpush1.msra.mxu0 %v794
    %943 = vmatprep.subr.mxu0 %v797
    %944 = vmatpush1.msra.mxu0 %v796
    %945 = vmatprep.subr.mxu0 %v799
    %946 = vmatpush1.msra.mxu0 %v798
    %947 = vmatprep.subr.mxu0 %v801
    %948 = vmatpush1.msra.mxu0 %v800
    %949 = vmatprep.subr.mxu0 %v803
    %950 = vmatpush1.msra.mxu0 %v802
    %951 = vmatprep.subr.mxu0 %v805
    %952 = vmatpush1.msra.mxu0 %v804
    %953 = vmatprep.subr.mxu0 %v807
    %954 = vmatpush1.msra.mxu0 %v806
    %955 = vmatprep.subr.mxu0 %v809
    %956 = vmatpush1.msra.mxu0 %v808
    %957 = vmatprep.subr.mxu0 %v811
    %958 = vmatpush1.msra.mxu0 %v810
    %959 = vmatprep.subr.mxu0 %v813
    %960 = vmatpush1.msra.mxu0 %v812
    %961 = vmatprep.subr.mxu0 %v815
    %962 = vmatpush1.msra.mxu0 %v814
    %963 = vmatprep.subr.mxu0 %v817
    %964 = vmatpush1.msra.mxu0 %v816
    %965 = vmatprep.subr.mxu0 %v819
    %966 = vmatpush1.msra.mxu0 %v818
    %967 = vmatprep.subr.mxu0 %v821
    %968 = vmatpush1.msra.mxu0 %v820
    %969 = vmatprep.subr.mxu0 %v823
    %970 = vmatpush1.msra.mxu0 %v822
    %971 = vmatprep.subr.mxu0 %v825
    %972 = vmatpush1.msra.mxu0 %v824
    %973 = vmatprep.subr.mxu0 %v827
    %974 = vmatpush1.msra.mxu0 %v826
    %975 = vmatprep.subr.mxu0 %v829
    %976 = vmatpush1.msra.mxu0 %v828
    %977 = vmatprep.mubr.f32.mxu0 %v701
    %978 = vmatmul.mubr.f32.gmra.mrb[0].mxu0 %v700
    %v979 = vpop.f32.mrb[0].mxu0
    %v980 = vadd.f32 %v909, %v979
    %v981 = vpop.f32.mrb[0].mxu0
    %v982 = vadd.f32 %v911, %v981
    %983 = vdwg.mxu0
    %v984 = vmax.f32 %v980, 0.0
    %v985 = vmax.f32 %v982, 0.0
    %v986 = vld [vmem:[%s9] sm:$0xff]
    %v987 = vld [vmem:[%s9 + $0x8] sm:$0xff]
    %v988 = vld [vmem:[%s9 + $0x10] sm:$0xff]
    %v989 = vld [vmem:[%s9 + $0x18] sm:$0xff]
    %v990 = vld [vmem:[%s9 + $0x20] sm:$0xff]
    %v991 = vld [vmem:[%s9 + $0x28] sm:$0xff]
    %v992 = vld [vmem:[%s9 + $0x30] sm:$0xff]
    %v993 = vld [vmem:[%s9 + $0x38] sm:$0xff]
    %v994 = vld [vmem:[%s9 + $0x40] sm:$0xff]
    %v995 = vld [vmem:[%s9 + $0x48] sm:$0xff]
    %v996 = vld [vmem:[%s9 + $0x50] sm:$0xff]
    %v997 = vld [vmem:[%s9 + $0x58] sm:$0xff]
    %v998 = vld [vmem:[%s9 + $0x60] sm:$0xff]
    %v999 = vld [vmem:[%s9 + $0x68] sm:$0xff]
    %v1000 = vld [vmem:[%s9 + $0x70] sm:$0xff]
    %v1001 = vld [vmem:[%s9 + $0x78] sm:$0xff]
    %v1002 = vld [vmem:[%s9 + $0x80] sm:$0xff]
    %v1003 = vld [vmem:[%s9 + $0x88] sm:$0xff]
    %v1004 = vld [vmem:[%s9 + $0x90] sm:$0xff]
    %v1005 = vld [vmem:[%s9 + $0x98] sm:$0xff]
    %v1006 = vld [vmem:[%s9 + $0xa0] sm:$0xff]
    %v1007 = vld [vmem:[%s9 + $0xa8] sm:$0xff]
    %v1008 = vld [vmem:[%s9 + $0xb0] sm:$0xff]
    %v1009 = vld [vmem:[%s9 + $0xb8] sm:$0xff]
    %v1010 = vld [vmem:[%s9 + $0xc0] sm:$0xff]
    %v1011 = vld [vmem:[%s9 + $0xc8] sm:$0xff]
    %v1012 = vld [vmem:[%s9 + $0xd0] sm:$0xff]
    %v1013 = vld [vmem:[%s9 + $0xd8] sm:$0xff]
    %v1014 = vld [vmem:[%s9 + $0xe0] sm:$0xff]
    %v1015 = vld [vmem:[%s9 + $0xe8] sm:$0xff]
    %v1016 = vld [vmem:[%s9 + $0xf0] sm:$0xff]
    %v1017 = vld [vmem:[%s9 + $0xf8] sm:$0xff]
    %v1018 = vld [vmem:[%s10] sm:$0x1]
    %v1020 = vlaneseq
    %v1021 = vshrl.u32 %v1020, 7
    %v1022 = vsub.s32 0, %v1021
    %v1023 = vrot.slane %v1018, %v1022
    %1025 = vmatprep.subr.mxu0 0.0
    %1026 = vmatpush1.msra.mxu0 %v986
    %1027 = vmatprep.subr.mxu0 0.0
    %1028 = vmatpush1.msra.mxu0 %v987
    %1029 = vmatprep.subr.mxu0 0.0
    %1030 = vmatpush1.msra.mxu0 %v988
    %1031 = vmatprep.subr.mxu0 0.0
    %1032 = vmatpush1.msra.mxu0 %v989
    %1033 = vmatprep.subr.mxu0 0.0
    %1034 = vmatpush1.msra.mxu0 %v990
    %1035 = vmatprep.subr.mxu0 0.0
    %1036 = vmatpush1.msra.mxu0 %v991
    %1037 = vmatprep.subr.mxu0 0.0
    %1038 = vmatpush1.msra.mxu0 %v992
    %1039 = vmatprep.subr.mxu0 0.0
    %1040 = vmatpush1.msra.mxu0 %v993
    %1041 = vmatprep.subr.mxu0 0.0
    %1042 = vmatpush1.msra.mxu0 %v994
    %1043 = vmatprep.subr.mxu0 0.0
    %1044 = vmatpush1.msra.mxu0 %v995
    %1045 = vmatprep.subr.mxu0 0.0
    %1046 = vmatpush1.msra.mxu0 %v996
    %1047 = vmatprep.subr.mxu0 0.0
    %1048 = vmatpush1.msra.mxu0 %v997
    %1049 = vmatprep.subr.mxu0 0.0
    %1050 = vmatpush1.msra.mxu0 %v998
    %1051 = vmatprep.subr.mxu0 0.0
    %1052 = vmatpush1.msra.mxu0 %v999
    %1053 = vmatprep.subr.mxu0 0.0
    %1054 = vmatpush1.msra.mxu0 %v1000
    %1055 = vmatprep.subr.mxu0 0.0
    %1056 = vmatpush1.msra.mxu0 %v1001
    %1057 = vmatprep.subr.mxu0 0.0
    %1058 = vmatpush1.msra.mxu0 %v1002
    %1059 = vmatprep.subr.mxu0 0.0
    %1060 = vmatpush1.msra.mxu0 %v1003
    %1061 = vmatprep.subr.mxu0 0.0
    %1062 = vmatpush1.msra.mxu0 %v1004
    %1063 = vmatprep.subr.mxu0 0.0
    %1064 = vmatpush1.msra.mxu0 %v1005
    %1065 = vmatprep.subr.mxu0 0.0
    %1066 = vmatpush1.msra.mxu0 %v1006
    %1067 = vmatprep.subr.mxu0 0.0
    %1068 = vmatpush1.msra.mxu0 %v1007
    %1069 = vmatprep.subr.mxu0 0.0
    %1070 = vmatpush1.msra.mxu0 %v1008
    %1071 = vmatprep.subr.mxu0 0.0
    %1072 = vmatpush1.msra.mxu0 %v1009
    %1073 = vmatprep.subr.mxu0 0.0
    %1074 = vmatpush1.msra.mxu0 %v1010
    %1075 = vmatprep.subr.mxu0 0.0
    %1076 = vmatpush1.msra.mxu0 %v1011
    %1077 = vmatprep.subr.mxu0 0.0
    %1078 = vmatpush1.msra.mxu0 %v1012
    %1079 = vmatprep.subr.mxu0 0.0
    %1080 = vmatpush1.msra.mxu0 %v1013
    %1081 = vmatprep.subr.mxu0 0.0
    %1082 = vmatpush1.msra.mxu0 %v1014
    %1083 = vmatprep.subr.mxu0 0.0
    %1084 = vmatpush1.msra.mxu0 %v1015
    %1085 = vmatprep.subr.mxu0 0.0
    %1086 = vmatpush1.msra.mxu0 %v1016
    %1087 = vmatprep.subr.mxu0 0.0
    %1088 = vmatpush1.msra.mxu0 %v1017
    %1089 = vmatprep.mubr.f32.mxu0 %v985
    %1090 = vmatmul.mubr.f32.gmra.mrb[0].mxu0 %v984
    %v1091 = vpop.f32.mrb[0].mxu0
    %v1092 = vadd.f32 %v1023, %v1091
    %v1093 = vpop.f32.mrb[0].mxu0
    %1094 = vdwg.mxu0
    %v1095 = vld [vmem:[%s1] sm:$0xff]
    %1097 = vset.pattern.permute.xlu0 0
    %1098 = vperm.xlu0 %1097, %v1095
    %v1099 = vpop.permute.xlu0 %1098
    %v1101 = vrcp.pop %v1099
    %v1102 = vmul.f32 %v1092, %v1101
    %vm1103 = vcmask 15360
    %1104 = vst.msk [vmem:[%s11] sm:$0xff] %vm1103, %v1102
    // Predicated region
    $region54: #{tpu_custom_call.1} parent=1 // pred_check
      _
    $region55: #{tpu_custom_call.1} parent=1 // pred_check_branch
      %1106 = sbr.rel (0) target = $region57
    $region56: #{tpu_custom_call.1} parent=1 // pred_region
      _
    $region57: #{tpu_custom_call.1} parent=1 // pred_fallthru
      _
    // Predicated region
    $region58: #{tpu_custom_call.1} parent=1 // pred_check
      _
    $region59: #{tpu_custom_call.1} parent=1 // pred_check_branch
      %1108 = sbr.rel (0) target = $region61
    $region60: #{tpu_custom_call.1} parent=1 // pred_region
      _
    $region61: #{tpu_custom_call.1} parent=1 // pred_fallthru
      _
    %1109 = vsyncpa [#allocation3], 1
    %1110 = vsyncpa [#allocation5], 1

</llo_original>
